<compile_context>
chip_gen: v7x
topology: tpu7x:2x2x1
jax: 0.10.0
libtpu: 0.0.40
codegen_flags: <defaults>
</compile_context>

<pallas_src>
import math
import numpy as np

import jax
import jax.numpy as jnp
from jax.experimental import pallas as pl
from jax.experimental.pallas import tpu as pltpu


# ---------------------------------------------------------------------------
# Static helpers (pure python / numpy, evaluated at trace time)
# ---------------------------------------------------------------------------

def _lerp_table(s_in):
  """lo/hi indices and fractional weights for 2x bilinear upsample, align_corners=True."""
  s_out = 2 * s_in
  scale = (s_in - 1) / (s_out - 1)
  lo, hi, f = [], [], []
  for i in range(s_out):
    p = i * scale
    l = min(int(math.floor(p)), s_in - 1)
    h = min(l + 1, s_in - 1)
    lo.append(l)
    hi.append(h)
    f.append(p - l)
  return lo, hi, np.asarray(f, np.float32)


def _upsample_pad_matrix(s_in):
  """(2*s_in + 2, s_in) matrix: bilinear x2 upsample (align_corners=True) + zero-pad of 1."""
  s_out = 2 * s_in
  m = np.zeros((s_out + 2, s_in), dtype=np.float32)
  lo, hi, f = _lerp_table(s_in)
  for i in range(s_out):
    m[1 + i, lo[i]] += 1.0 - f[i]
    m[1 + i, hi[i]] += f[i]
  return m


def _upsample_matrix(s_in):
  """Dense interpolation matrix (reference path only)."""
  return jnp.asarray(_upsample_pad_matrix(s_in)[1:-1, :])


# ---------------------------------------------------------------------------
# Fused Pallas kernel
# ---------------------------------------------------------------------------

def _make_fused_kernel(dims):
  (B, H, W, C2, outer_nc, Ho, Wo) = dims
  BH = B * H
  n_stat = B * H * W  # BatchNorm reduction count (N*H*W)

  def kernel(xd_ref, bd_ref, cond_ref, ah_ref, bu_ref,
             gamma_ref, beta_ref, gpool_ref, gbcast_ref, o_ref):
    # ---- down path: 4x4 stride-2 conv as ONE bf16 MXU matmul into (wo*C2 + c) lanes ----
    acc = jnp.dot(xd_ref[...], bd_ref[...],
                  preferred_element_type=jnp.float32)                 # (B*Ho, Wo*C2)

    # ---- cond concat + uprelu: cond lanes of acc are structural zeros -> one add + relu ----
    act = jnp.maximum(acc + cond_ref[...], 0.0)                       # (B*Ho, Wo*C2)

    # ---- H bilinear x2 + H-pad + 3x3 H-tap expansion: one small block-diagonal f32 matmul ----
    h_all = jnp.dot(ah_ref[...], act,
                    preferred_element_type=jnp.float32)               # (3*B*H, Wo*C2)
    lhs_up = jnp.concatenate(                                         # 128-aligned lane concat
        [h_all[0:BH], h_all[BH:2 * BH], h_all[2 * BH:3 * BH]], axis=-1
    ).astype(jnp.bfloat16)                                            # (B*H, 3*Wo*C2)

    # ---- W-lerp + W-pad + 3x3 conv folded into one bf16 matmul (K merged over 3 H taps) ----
    acc2 = jnp.dot(lhs_up, bu_ref[...],
                   preferred_element_type=jnp.float32)                # (B*H, W*outer_nc)

    # ---- one-pass BatchNorm2d (training batch stats, biased variance) ----
    s1 = jnp.sum(acc2, axis=0, keepdims=True)                         # (1, W*outer_nc)
    s2 = jnp.sum(acc2 * acc2, axis=0, keepdims=True)                  # (1, W*outer_nc)
    sum_c = jnp.dot(s1, gpool_ref[...], preferred_element_type=jnp.float32)   # (1, outer_nc)
    sq_c = jnp.dot(s2, gpool_ref[...], preferred_element_type=jnp.float32)    # (1, outer_nc)
    mean_c = sum_c * (1.0 / n_stat)
    var_c = sq_c * (1.0 / n_stat) - mean_c * mean_c
    scale_c = gamma_ref[...] * jax.lax.rsqrt(var_c + 1e-5)            # (1, outer_nc)
    bias_c = beta_ref[...] - mean_c * scale_c                         # (1, outer_nc)
    scale_l = jnp.dot(scale_c, gbcast_ref[...], preferred_element_type=jnp.float32)
    bias_l = jnp.dot(bias_c, gbcast_ref[...], preferred_element_type=jnp.float32)
    o_ref[...] = acc2 * scale_l + bias_l                              # lane-dense 128-wide store

  return kernel


# ---------------------------------------------------------------------------
# Wrapper: trace-time layout / weight composition + pallas_call
# ---------------------------------------------------------------------------

@jax.jit
def cond_unet_block_innermost(x_nchw, cond, params):
  w_down = params["w_down"].astype(jnp.float32)   # (C1, Cin, 4, 4)
  w_up = params["w_up"].astype(jnp.float32)       # (outer_nc, C2, 3, 3)
  gamma = params["gamma"].astype(jnp.float32)     # (outer_nc,)
  beta = params["beta"].astype(jnp.float32)       # (outer_nc,)

  B, Cin, H, W = x_nchw.shape
  C1 = w_down.shape[0]
  cond_nc = cond.shape[1]
  C2 = C1 + cond_nc
  outer_nc = w_up.shape[0]
  Ho, Wo = H // 2, W // 2
  Hp, Wp = H + 2, W + 2

  x = x_nchw.astype(jnp.float32)
  cond_f = cond.astype(jnp.float32)

  # ---- tap-major down-conv LHS: LeakyReLU once per element, then ~2x row duplication ----
  x_nhwc = jnp.transpose(x, (0, 2, 3, 1))                             # (B, H, W, Cin)
  xl = jnp.where(x_nhwc > 0, x_nhwc, 0.2 * x_nhwc)
  xp = jnp.pad(xl, ((0, 0), (1, 1), (1, 1), (0, 0)))                  # (B, Hp, Wp, Cin)
  xp2 = xp.reshape(B, Hp, Wp * Cin)
  taps = [xp2[:, kh:kh + 2 * Ho:2, :] for kh in range(4)]             # each (B, Ho, Wp*Cin)
  xd = jnp.concatenate(taps, axis=-1).reshape(B * Ho, 4 * Wp * Cin).astype(jnp.bfloat16)

  # ---- stacked banded down RHS, output lanes wo*C2 + c; cond lanes left zero ----
  seld = np.zeros((Wp, Wo, 4), np.float32)
  for wo in range(Wo):
    for kw in range(4):
      seld[2 * wo + kw, wo, kw] = 1.0
  bd5 = jnp.einsum("jwk,oihk->hjiwo", jnp.asarray(seld), w_down)      # (4, Wp, Cin, Wo, C1)
  bd5 = jnp.pad(bd5, ((0, 0), (0, 0), (0, 0), (0, 0), (0, cond_nc)))  # -> (..., Wo, C2)
  bd = bd5.reshape(4 * Wp * Cin, Wo * C2).astype(jnp.bfloat16)

  # ---- cond rows: raw cond scattered into the cond lanes (relu is applied in-kernel) ----
  cond_blk = jnp.pad(jnp.broadcast_to(cond_f[:, None, :], (B, Wo, cond_nc)),
                     ((0, 0), (0, 0), (C1, 0)))                       # (B, Wo, C2)
  cond_rows = jnp.broadcast_to(cond_blk.reshape(B, 1, Wo * C2),
                               (B, Ho, Wo * C2)).reshape(B * Ho, Wo * C2)

  # ---- H upsample + H pad + 3-tap shift as a block-diagonal (3*B*H, B*Ho) matrix ----
  ah_pad = _upsample_pad_matrix(Ho)                                   # (H+2, Ho)
  eye_b = np.eye(B, dtype=np.float32)
  ah = jnp.asarray(np.concatenate(
      [np.kron(eye_b, ah_pad[kh:kh + H, :]) for kh in range(3)], axis=0))   # (3*B*H, B*Ho)

  # ---- up RHS: banded 3x3 conv, W-upsample+pad folded in, taps stacked along K ----
  selu = np.zeros((Wp, W, 3), np.float32)
  for w in range(W):
    for kw in range(3):
      selu[w + kw, w, kw] = 1.0
  bu5 = jnp.einsum("jwk,oihk->hjiwo", jnp.asarray(selu), w_up)        # (3, Wp, C2, W, outer_nc)
  aw = jnp.asarray(_upsample_pad_matrix(Wo))                          # (Wp, Wo): W lerp + pad
  bu_folded = jnp.einsum("jv,hjiwo->hviwo", aw, bu5)                  # (3, Wo, C2, W, outer_nc)
  bu = bu_folded.reshape(3 * Wo * C2, W * outer_nc).astype(jnp.bfloat16)

  # ---- BatchNorm channel pool / broadcast matrices (channels live at lane w*outer_nc + c) ----
  g_np = np.zeros((W * outer_nc, outer_nc), np.float32)
  for w in range(W):
    for c in range(outer_nc):
      g_np[w * outer_nc + c, c] = 1.0
  gpool = jnp.asarray(g_np)
  gbcast = jnp.asarray(g_np.T.copy())

  kernel = _make_fused_kernel((B, H, W, C2, outer_nc, Ho, Wo))

  args = (xd, bd, cond_rows, ah, bu,
          gamma.reshape(1, outer_nc), beta.reshape(1, outer_nc), gpool, gbcast)

  out2d = pl.pallas_call(
      kernel,
      out_shape=jax.ShapeDtypeStruct((B * H, W * outer_nc), jnp.float32),
      in_specs=[pl.BlockSpec(memory_space=pltpu.MemorySpace.VMEM) for _ in args],
      out_specs=pl.BlockSpec(memory_space=pltpu.MemorySpace.VMEM),
  )(*args)

  x_up = jnp.transpose(out2d.reshape(B, H, W, outer_nc), (0, 3, 1, 2))  # (B, outer_nc, H, W)
  return jnp.concatenate([x, x_up], axis=1)                             # skip: [x, x_]


# ---------------------------------------------------------------------------
# Pure-JAX reference (XLA convs, HIGHEST precision) for validation
# ---------------------------------------------------------------------------

def reference(x, cond, params):
  w_down, w_up = params["w_down"], params["w_up"]
  hp = jax.lax.Precision.HIGHEST
  lrelu = jnp.where(x > 0, x, 0.2 * x)
  d = jax.lax.conv_general_dilated(lrelu, w_down, (2, 2), ((1, 1), (1, 1)),
                                   dimension_numbers=("NCHW", "OIHW", "NCHW"),
                                   precision=hp)
  B, _, Ho, Wo = d.shape
  cond_map = cond[:, :, None, None] * jnp.ones((B, cond.shape[1], Ho, Wo), jnp.float32)
  y = jnp.maximum(jnp.concatenate([d, cond_map], axis=1), 0.0)
  Uh, Uw = _upsample_matrix(Ho), _upsample_matrix(Wo)
  up = jnp.einsum("hH,bcHW,wW->bchw", Uh, y, Uw, precision=hp)
  c = jax.lax.conv_general_dilated(up, w_up, (1, 1), ((1, 1), (1, 1)),
                                   dimension_numbers=("NCHW", "OIHW", "NCHW"),
                                   precision=hp)
  mean = c.mean(axis=(0, 2, 3), keepdims=True)
  var = ((c - mean) ** 2).mean(axis=(0, 2, 3), keepdims=True)
  xn = (c - mean) * jax.lax.rsqrt(var + 1e-5)
  xo = xn * params["gamma"][None, :, None, None] + params["beta"][None, :, None, None]
  return jnp.concatenate([x, xo], axis=1)


# ---------------------------------------------------------------------------

if __name__ == "__main__":
  # Module config: innermost block with outer_nc=8, inner_input_nc=8, input_nc=8, cond_nc=8.
  B, Cin, H, W = 2, 8, 16, 16
  C1, cond_nc, outer_nc = 8, 8, 8
  C2 = C1 + cond_nc

  key = jax.random.PRNGKey(0)
  kx, kc, k1, k2, k3, k4 = jax.random.split(key, 6)
  x = jax.random.normal(kx, (B, Cin, H, W), jnp.float32)
  cond = jax.random.normal(kc, (B, cond_nc), jnp.float32)
  params = {
      "w_down": 0.1 * jax.random.normal(k1, (C1, Cin, 4, 4), jnp.float32),
      "w_up": 0.1 * jax.random.normal(k2, (outer_nc, C2, 3, 3), jnp.float32),
      "gamma": 1.0 + 0.1 * jax.random.normal(k3, (outer_nc,), jnp.float32),
      "beta": 0.1 * jax.random.normal(k4, (outer_nc,), jnp.float32),
  }

  out = jax.block_until_ready(cond_unet_block_innermost(x, cond, params))
  assert out.shape == (B, Cin + outer_nc, H, W), out.shape

  ref = jax.block_until_ready(reference(x, cond, params))
  # Tolerance accounts for bf16 MXU operands (f32 accumulation, f32 VPU / BatchNorm math).
  np.testing.assert_allclose(np.asarray(out), np.asarray(ref), rtol=3e-2, atol=3e-2)

  print("KERNEL_OK")
</pallas_src>

<mosaic_0001>
module attributes {stable_mosaic.version = 11 : i64} {
  func.func @kernel(%arg0: memref<16x576xbf16, #tpu.memory_space<vmem>>, %arg1: memref<576x128xbf16, #tpu.memory_space<vmem>>, %arg2: memref<16x128xf32, #tpu.memory_space<vmem>>, %arg3: memref<96x16xf32, #tpu.memory_space<vmem>>, %arg4: memref<384x128xbf16, #tpu.memory_space<vmem>>, %arg5: memref<1x8xf32, #tpu.memory_space<vmem>>, %arg6: memref<1x8xf32, #tpu.memory_space<vmem>>, %arg7: memref<128x8xf32, #tpu.memory_space<vmem>>, %arg8: memref<8x128xf32, #tpu.memory_space<vmem>>, %arg9: memref<32x128xf32, #tpu.memory_space<vmem>>) attributes {dimension_semantics = [], scalar_prefetch = 0 : i64, scratch_operands = 0 : i64, tpu.core_type = #tpu.core_type<tc>} {
    %c0 = arith.constant 0 : index
    %c0_0 = arith.constant 0 : index
    %0 = vector.load %arg0[%c0, %c0_0] : memref<16x576xbf16, #tpu.memory_space<vmem>>, vector<16x576xbf16>
    %c0_1 = arith.constant 0 : index
    %c0_2 = arith.constant 0 : index
    %1 = vector.load %arg1[%c0_1, %c0_2] : memref<576x128xbf16, #tpu.memory_space<vmem>>, vector<576x128xbf16>
    %cst = arith.constant dense<0.000000e+00> : vector<16x128xf32>
    %2 = tpu.matmul %0, %1, %cst {dimension_numbers = #tpu.dot_dimension_numbers<[1], [0], [0], [1], [0, 0, 1, 1], [], []>} : vector<16x576xbf16>, vector<576x128xbf16>, vector<16x128xf32> -> vector<16x128xf32>
    %c0_3 = arith.constant 0 : index
    %c0_4 = arith.constant 0 : index
    %3 = vector.load %arg2[%c0_3, %c0_4] : memref<16x128xf32, #tpu.memory_space<vmem>>, vector<16x128xf32>
    %4 = arith.addf %2, %3 : vector<16x128xf32>
    %cst_5 = arith.constant 0.000000e+00 : f32
    %5 = vector.broadcast %cst_5 : f32 to vector<16x128xf32>
    %6 = arith.maximumf %4, %5 : vector<16x128xf32>
    %c0_6 = arith.constant 0 : index
    %c0_7 = arith.constant 0 : index
    %7 = vector.load %arg3[%c0_6, %c0_7] : memref<96x16xf32, #tpu.memory_space<vmem>>, vector<96x16xf32>
    %cst_8 = arith.constant dense<0.000000e+00> : vector<96x128xf32>
    %8 = tpu.matmul %7, %6, %cst_8 {dimension_numbers = #tpu.dot_dimension_numbers<[1], [0], [0], [1], [0, 0, 1, 1], [], []>} : vector<96x16xf32>, vector<16x128xf32>, vector<96x128xf32> -> vector<96x128xf32>
    %9 = vector.extract_strided_slice %8 {offsets = [0, 0], sizes = [32, 128], strides = [1, 1]} : vector<96x128xf32> to vector<32x128xf32>
    %10 = vector.extract_strided_slice %8 {offsets = [32, 0], sizes = [32, 128], strides = [1, 1]} : vector<96x128xf32> to vector<32x128xf32>
    %11 = vector.extract_strided_slice %8 {offsets = [64, 0], sizes = [32, 128], strides = [1, 1]} : vector<96x128xf32> to vector<32x128xf32>
    %12 = tpu.concatenate %9, %10, %11 in 1 : vector<32x128xf32>, vector<32x128xf32>, vector<32x128xf32> -> vector<32x384xf32>
    %13 = arith.truncf %12 : vector<32x384xf32> to vector<32x384xbf16>
    %c0_9 = arith.constant 0 : index
    %c0_10 = arith.constant 0 : index
    %14 = vector.load %arg4[%c0_9, %c0_10] : memref<384x128xbf16, #tpu.memory_space<vmem>>, vector<384x128xbf16>
    %cst_11 = arith.constant dense<0.000000e+00> : vector<32x128xf32>
    %15 = tpu.matmul %13, %14, %cst_11 {dimension_numbers = #tpu.dot_dimension_numbers<[1], [0], [0], [1], [0, 0, 1, 1], [], []>} : vector<32x384xbf16>, vector<384x128xbf16>, vector<32x128xf32> -> vector<32x128xf32>
    %cst_12 = arith.constant dense<0.000000e+00> : vector<128xf32>
    %16 = vector.multi_reduction <add>, %15, %cst_12 [0] : vector<32x128xf32> to vector<128xf32>
    %17 = vector.shape_cast %16 : vector<128xf32> to vector<1x128xf32>
    %18 = arith.mulf %15, %15 : vector<32x128xf32>
    %cst_13 = arith.constant dense<0.000000e+00> : vector<128xf32>
    %19 = vector.multi_reduction <add>, %18, %cst_13 [0] : vector<32x128xf32> to vector<128xf32>
    %20 = vector.shape_cast %19 : vector<128xf32> to vector<1x128xf32>
    %c0_14 = arith.constant 0 : index
    %c0_15 = arith.constant 0 : index
    %21 = vector.load %arg7[%c0_14, %c0_15] : memref<128x8xf32, #tpu.memory_space<vmem>>, vector<128x8xf32>
    %cst_16 = arith.constant dense<0.000000e+00> : vector<1x8xf32>
    %22 = tpu.matmul %17, %21, %cst_16 {dimension_numbers = #tpu.dot_dimension_numbers<[1], [0], [0], [1], [0, 0, 1, 1], [], []>} : vector<1x128xf32>, vector<128x8xf32>, vector<1x8xf32> -> vector<1x8xf32>
    %c0_17 = arith.constant 0 : index
    %c0_18 = arith.constant 0 : index
    %23 = vector.load %arg7[%c0_17, %c0_18] : memref<128x8xf32, #tpu.memory_space<vmem>>, vector<128x8xf32>
    %cst_19 = arith.constant dense<0.000000e+00> : vector<1x8xf32>
    %24 = tpu.matmul %20, %23, %cst_19 {dimension_numbers = #tpu.dot_dimension_numbers<[1], [0], [0], [1], [0, 0, 1, 1], [], []>} : vector<1x128xf32>, vector<128x8xf32>, vector<1x8xf32> -> vector<1x8xf32>
    %cst_20 = arith.constant 0.001953125 : f32
    %25 = vector.broadcast %cst_20 : f32 to vector<1x8xf32>
    %26 = arith.mulf %22, %25 : vector<1x8xf32>
    %cst_21 = arith.constant 0.001953125 : f32
    %27 = vector.broadcast %cst_21 : f32 to vector<1x8xf32>
    %28 = arith.mulf %24, %27 : vector<1x8xf32>
    %29 = arith.mulf %26, %26 : vector<1x8xf32>
    %30 = arith.subf %28, %29 : vector<1x8xf32>
    %c0_22 = arith.constant 0 : index
    %c0_23 = arith.constant 0 : index
    %31 = vector.load %arg5[%c0_22, %c0_23] : memref<1x8xf32, #tpu.memory_space<vmem>>, vector<1x8xf32>
    %cst_24 = arith.constant 9.99999974E-6 : f32
    %32 = vector.broadcast %cst_24 : f32 to vector<1x8xf32>
    %33 = arith.addf %30, %32 : vector<1x8xf32>
    %34 = math.rsqrt %33 : vector<1x8xf32>
    %35 = arith.mulf %31, %34 : vector<1x8xf32>
    %c0_25 = arith.constant 0 : index
    %c0_26 = arith.constant 0 : index
    %36 = vector.load %arg6[%c0_25, %c0_26] : memref<1x8xf32, #tpu.memory_space<vmem>>, vector<1x8xf32>
    %37 = arith.mulf %26, %35 : vector<1x8xf32>
    %38 = arith.subf %36, %37 : vector<1x8xf32>
    %c0_27 = arith.constant 0 : index
    %c0_28 = arith.constant 0 : index
    %39 = vector.load %arg8[%c0_27, %c0_28] : memref<8x128xf32, #tpu.memory_space<vmem>>, vector<8x128xf32>
    %cst_29 = arith.constant dense<0.000000e+00> : vector<1x128xf32>
    %40 = tpu.matmul %35, %39, %cst_29 {dimension_numbers = #tpu.dot_dimension_numbers<[1], [0], [0], [1], [0, 0, 1, 1], [], []>} : vector<1x8xf32>, vector<8x128xf32>, vector<1x128xf32> -> vector<1x128xf32>
    %c0_30 = arith.constant 0 : index
    %c0_31 = arith.constant 0 : index
    %41 = vector.load %arg8[%c0_30, %c0_31] : memref<8x128xf32, #tpu.memory_space<vmem>>, vector<8x128xf32>
    %cst_32 = arith.constant dense<0.000000e+00> : vector<1x128xf32>
    %42 = tpu.matmul %38, %41, %cst_32 {dimension_numbers = #tpu.dot_dimension_numbers<[1], [0], [0], [1], [0, 0, 1, 1], [], []>} : vector<1x8xf32>, vector<8x128xf32>, vector<1x128xf32> -> vector<1x128xf32>
    %43 = vector.broadcast %40 : vector<1x128xf32> to vector<32x128xf32>
    %44 = arith.mulf %15, %43 : vector<32x128xf32>
    %45 = vector.broadcast %42 : vector<1x128xf32> to vector<32x128xf32>
    %46 = arith.addf %44, %45 : vector<32x128xf32>
    %c0_33 = arith.constant 0 : index
    %c0_34 = arith.constant 0 : index
    %47 = vector.load %arg9[%c0_33, %c0_34] : memref<32x128xf32, #tpu.memory_space<vmem>>, vector<32x128xf32>
    tpu.vector_store %arg9[%c0_33, %c0_34], %46 {strides = array<i32>} : memref<32x128xf32, #tpu.memory_space<vmem>>, vector<32x128xf32>,
    return
  }
}

</mosaic_0001>

<llo_original>
// kernel: cond_unet_block_innermost.1
$region0: #{cond_unet_block_innermost.1}
  #allocation0 [shape = 'u32[]', space=smem, size = 0x4, offset = 0x4, fixed_abs, tag = 'smem constant byte address 0x4 - core index']
  #allocation1 [shape = 'u32[144,128]{1,0:T(1,128)}', space=vmem, size = 0x12000, scoped, tag = 'internal scratch']
  %s0 = inlined_call_operand.vmem [shape: bf16[16,576], index: 0, kind: input, shape index: {}]
  %s1 = inlined_call_operand.vmem [shape: bf16[576,128], index: 1, kind: input, shape index: {}]
  %s2 = inlined_call_operand.vmem [shape: f32[16,128], index: 2, kind: input, shape index: {}]
  %s3 = inlined_call_operand.vmem [shape: f32[96,16], index: 3, kind: input, shape index: {}]
  %s4 = inlined_call_operand.vmem [shape: bf16[384,128], index: 4, kind: input, shape index: {}]
  %s5 = inlined_call_operand.vmem [shape: f32[1,8], index: 5, kind: input, shape index: {}]
  %s6 = inlined_call_operand.vmem [shape: f32[1,8], index: 6, kind: input, shape index: {}]
  %s7 = inlined_call_operand.vmem [shape: f32[128,8], index: 7, kind: input, shape index: {}]
  %s8 = inlined_call_operand.vmem [shape: f32[8,128], index: 8, kind: input, shape index: {}]
  %s9 = inlined_call_operand.vmem [shape: f32[32,128], index: 9, kind: output, shape index: {}]
  %s10 = sld [smem:[#allocation0]]
  $region46: #{cond_unet_block_innermost.1} parent=0
    _
  %s12 = ssub.s32 1, %s10
  %s13 = scalar_select 0, %s12, %s10
  // Predicated region
  $region2: #{cond_unet_block_innermost.1} parent=0 // pred_check
    _
  $region3: #{cond_unet_block_innermost.1} parent=0 // pred_check_branch
    %15 = sbr.rel (0) target = $region5
  $region4: #{cond_unet_block_innermost.1} parent=0 // pred_region
    _
  $region5: #{cond_unet_block_innermost.1} parent=0 // pred_fallthru
    _
  // Predicated region
  $region6: #{cond_unet_block_innermost.1} parent=0 // pred_check
    _
  $region7: #{cond_unet_block_innermost.1} parent=0 // pred_check_branch
    %17 = sbr.rel (0) target = $region9
  $region8: #{cond_unet_block_innermost.1} parent=0 // pred_region
    _
  $region9: #{cond_unet_block_innermost.1} parent=0 // pred_fallthru
    _
  // Predicated region
  $region10: #{cond_unet_block_innermost.1} parent=0 // pred_check
    _
  $region11: #{cond_unet_block_innermost.1} parent=0 // pred_check_branch
    %19 = sbr.rel (0) target = $region13
  $region12: #{cond_unet_block_innermost.1} parent=0 // pred_region
    _
  $region13: #{cond_unet_block_innermost.1} parent=0 // pred_fallthru
    _
  // Predicated region
  $region14: #{cond_unet_block_innermost.1} parent=0 // pred_check
    _
  $region15: #{cond_unet_block_innermost.1} parent=0 // pred_check_branch
    %21 = sbr.rel (0) target = $region17
  $region16: #{cond_unet_block_innermost.1} parent=0 // pred_region
    _
  $region17: #{cond_unet_block_innermost.1} parent=0 // pred_fallthru
    _
  // Predicated region
  $region18: #{cond_unet_block_innermost.1} parent=0 // pred_check
    _
  $region19: #{cond_unet_block_innermost.1} parent=0 // pred_check_branch
    %23 = sbr.rel (0) target = $region21
  $region20: #{cond_unet_block_innermost.1} parent=0 // pred_region
    _
  $region21: #{cond_unet_block_innermost.1} parent=0 // pred_fallthru
    _
  // Predicated region
  $region22: #{cond_unet_block_innermost.1} parent=0 // pred_check
    _
  $region23: #{cond_unet_block_innermost.1} parent=0 // pred_check_branch
    %25 = sbr.rel (0) target = $region25
  $region24: #{cond_unet_block_innermost.1} parent=0 // pred_region
    _
  $region25: #{cond_unet_block_innermost.1} parent=0 // pred_fallthru
    _
  // Predicated region
  $region26: #{cond_unet_block_innermost.1} parent=0 // pred_check
    _
  $region27: #{cond_unet_block_innermost.1} parent=0 // pred_check_branch
    %27 = sbr.rel (0) target = $region29
  $region28: #{cond_unet_block_innermost.1} parent=0 // pred_region
    _
  $region29: #{cond_unet_block_innermost.1} parent=0 // pred_fallthru
    _
  // Predicated region
  $region30: #{cond_unet_block_innermost.1} parent=0 // pred_check
    _
  $region31: #{cond_unet_block_innermost.1} parent=0 // pred_check_branch
    %29 = sbr.rel (0) target = $region33
  $region32: #{cond_unet_block_innermost.1} parent=0 // pred_region
    _
  $region33: #{cond_unet_block_innermost.1} parent=0 // pred_fallthru
    _
  // Predicated region
  $region34: #{cond_unet_block_innermost.1} parent=0 // pred_check
    _
  $region35: #{cond_unet_block_innermost.1} parent=0 // pred_check_branch
    %31 = sbr.rel (0) target = $region37
  $region36: #{cond_unet_block_innermost.1} parent=0 // pred_region
    _
  $region37: #{cond_unet_block_innermost.1} parent=0 // pred_fallthru
    _
  %v33 = vld [vmem:[%s0] sm:$0xff]
  %v34 = vld [vmem:[%s0 + $0x8] sm:$0xff]
  %v35 = vld [vmem:[%s0 + $0x10] sm:$0xf]
  %v36 = vld [vmem:[%s0 + $0x14] sm:$0xff]
  %v37 = vld [vmem:[%s0 + $0x1c] sm:$0xff]
  %v38 = vld [vmem:[%s0 + $0x24] sm:$0xf]
  %v39 = vld [vmem:[%s1] sm:$0xf]
  %v40 = vld [vmem:[%s1 + $0x4] sm:$0xf]
  %v41 = vld [vmem:[%s1 + $0x8] sm:$0xf]
  %v42 = vld [vmem:[%s1 + $0xc] sm:$0xf]
  %v43 = vld [vmem:[%s1 + $0x10] sm:$0xf]
  %v44 = vld [vmem:[%s1 + $0x14] sm:$0xf]
  %v45 = vld [vmem:[%s1 + $0x18] sm:$0xf]
  %v46 = vld [vmem:[%s1 + $0x1c] sm:$0xf]
  %v47 = vld [vmem:[%s1 + $0x20] sm:$0xf]
  %v48 = vld [vmem:[%s1 + $0x24] sm:$0xf]
  %v49 = vld [vmem:[%s1 + $0x28] sm:$0xf]
  %v50 = vld [vmem:[%s1 + $0x2c] sm:$0xf]
  %v51 = vld [vmem:[%s1 + $0x30] sm:$0xf]
  %v52 = vld [vmem:[%s1 + $0x34] sm:$0xf]
  %v53 = vld [vmem:[%s1 + $0x38] sm:$0xf]
  %v54 = vld [vmem:[%s1 + $0x3c] sm:$0xf]
  %v55 = vld [vmem:[%s1 + $0x40] sm:$0xf]
  %v56 = vld [vmem:[%s1 + $0x44] sm:$0xf]
  %v57 = vld [vmem:[%s1 + $0x48] sm:$0xf]
  %v58 = vld [vmem:[%s1 + $0x4c] sm:$0xf]
  %v59 = vld [vmem:[%s1 + $0x50] sm:$0xf]
  %v60 = vld [vmem:[%s1 + $0x54] sm:$0xf]
  %v61 = vld [vmem:[%s1 + $0x58] sm:$0xf]
  %v62 = vld [vmem:[%s1 + $0x5c] sm:$0xf]
  %v63 = vld [vmem:[%s1 + $0x60] sm:$0xf]
  %v64 = vld [vmem:[%s1 + $0x64] sm:$0xf]
  %v65 = vld [vmem:[%s1 + $0x68] sm:$0xf]
  %v66 = vld [vmem:[%s1 + $0x6c] sm:$0xf]
  %v67 = vld [vmem:[%s1 + $0x70] sm:$0xf]
  %v68 = vld [vmem:[%s1 + $0x74] sm:$0xf]
  %v69 = vld [vmem:[%s1 + $0x78] sm:$0xf]
  %v70 = vld [vmem:[%s1 + $0x7c] sm:$0xf]
  %v71 = vld [vmem:[%s1 + $0x80] sm:$0xf]
  %v72 = vld [vmem:[%s1 + $0x84] sm:$0xf]
  %v73 = vld [vmem:[%s1 + $0x88] sm:$0xf]
  %v74 = vld [vmem:[%s1 + $0x8c] sm:$0xf]
  %v75 = vld [vmem:[%s1 + $0x90] sm:$0xf]
  %v76 = vld [vmem:[%s1 + $0x94] sm:$0xf]
  %v77 = vld [vmem:[%s1 + $0x98] sm:$0xf]
  %v78 = vld [vmem:[%s1 + $0x9c] sm:$0xf]
  %v79 = vld [vmem:[%s1 + $0xa0] sm:$0xf]
  %v80 = vld [vmem:[%s1 + $0xa4] sm:$0xf]
  %v81 = vld [vmem:[%s1 + $0xa8] sm:$0xf]
  %v82 = vld [vmem:[%s1 + $0xac] sm:$0xf]
  %v83 = vld [vmem:[%s1 + $0xb0] sm:$0xf]
  %v84 = vld [vmem:[%s1 + $0xb4] sm:$0xf]
  %v85 = vld [vmem:[%s1 + $0xb8] sm:$0xf]
  %v86 = vld [vmem:[%s1 + $0xbc] sm:$0xf]
  %v87 = vld [vmem:[%s1 + $0xc0] sm:$0xf]
  %v88 = vld [vmem:[%s1 + $0xc4] sm:$0xf]
  %v89 = vld [vmem:[%s1 + $0xc8] sm:$0xf]
  %v90 = vld [vmem:[%s1 + $0xcc] sm:$0xf]
  %v91 = vld [vmem:[%s1 + $0xd0] sm:$0xf]
  %v92 = vld [vmem:[%s1 + $0xd4] sm:$0xf]
  %v93 = vld [vmem:[%s1 + $0xd8] sm:$0xf]
  %v94 = vld [vmem:[%s1 + $0xdc] sm:$0xf]
  %v95 = vld [vmem:[%s1 + $0xe0] sm:$0xf]
  %v96 = vld [vmem:[%s1 + $0xe4] sm:$0xf]
  %v97 = vld [vmem:[%s1 + $0xe8] sm:$0xf]
  %v98 = vld [vmem:[%s1 + $0xec] sm:$0xf]
  %v99 = vld [vmem:[%s1 + $0xf0] sm:$0xf]
  %v100 = vld [vmem:[%s1 + $0xf4] sm:$0xf]
  %v101 = vld [vmem:[%s1 + $0xf8] sm:$0xf]
  %v102 = vld [vmem:[%s1 + $0xfc] sm:$0xf]
  %v103 = vld [vmem:[%s1 + $0x100] sm:$0xf]
  %v104 = vld [vmem:[%s1 + $0x104] sm:$0xf]
  %v105 = vld [vmem:[%s1 + $0x108] sm:$0xf]
  %v106 = vld [vmem:[%s1 + $0x10c] sm:$0xf]
  %v107 = vld [vmem:[%s1 + $0x110] sm:$0xf]
  %v108 = vld [vmem:[%s1 + $0x114] sm:$0xf]
  %v109 = vld [vmem:[%s1 + $0x118] sm:$0xf]
  %v110 = vld [vmem:[%s1 + $0x11c] sm:$0xf]
  %v111 = vld [vmem:[%s2] sm:$0xff]
  %v112 = vld [vmem:[%s2 + $0x8] sm:$0xff]
  %v119 = vunpack.c.l.b16 %v33
  %v120 = vunpack.c.h.b16 %v33
  %v121 = vunpack.c.l.b16 %v34
  %v122 = vunpack.c.h.b16 %v34
  %v123 = vunpack.c.l.b16 %v35
  %v124 = vunpack.c.l.b16 %v36
  %v125 = vunpack.c.h.b16 %v36
  %v126 = vunpack.c.l.b16 %v37
  %v127 = vunpack.c.h.b16 %v37
  %v128 = vunpack.c.l.b16 %v38
  %v129 = vpack.c.b16 %v124, %v119
  %v130 = vpack.c.b16 %v125, %v120
  %v131 = vpack.c.b16 %v126, %v121
  %v132 = vpack.c.b16 %v127, %v122
  %v133 = vpack.c.b16 %v128, %v123
  %v210 = vunpack.c.l.b16 %v39
  %v211 = vunpack.c.l.b16 %v40
  %v212 = vunpack.c.l.b16 %v41
  %v213 = vunpack.c.l.b16 %v42
  %v214 = vunpack.c.l.b16 %v43
  %v215 = vunpack.c.l.b16 %v44
  %v216 = vunpack.c.l.b16 %v45
  %v217 = vunpack.c.l.b16 %v46
  %v218 = vunpack.c.l.b16 %v47
  %v219 = vunpack.c.l.b16 %v48
  %v220 = vunpack.c.l.b16 %v49
  %v221 = vunpack.c.l.b16 %v50
  %v222 = vunpack.c.l.b16 %v51
  %v223 = vunpack.c.l.b16 %v52
  %v224 = vunpack.c.l.b16 %v53
  %v225 = vunpack.c.l.b16 %v54
  %v226 = vunpack.c.l.b16 %v55
  %v227 = vunpack.c.l.b16 %v56
  %v228 = vunpack.c.l.b16 %v57
  %v229 = vunpack.c.l.b16 %v58
  %v230 = vunpack.c.l.b16 %v59
  %v231 = vunpack.c.l.b16 %v60
  %v232 = vunpack.c.l.b16 %v61
  %v233 = vunpack.c.l.b16 %v62
  %v234 = vunpack.c.l.b16 %v63
  %v235 = vunpack.c.l.b16 %v64
  %v236 = vunpack.c.l.b16 %v65
  %v237 = vunpack.c.l.b16 %v66
  %v238 = vunpack.c.l.b16 %v67
  %v239 = vunpack.c.l.b16 %v68
  %v240 = vunpack.c.l.b16 %v69
  %v241 = vunpack.c.l.b16 %v70
  %v242 = vunpack.c.l.b16 %v71
  %v243 = vunpack.c.l.b16 %v72
  %v244 = vunpack.c.l.b16 %v73
  %v245 = vunpack.c.l.b16 %v74
  %v246 = vunpack.c.l.b16 %v75
  %v247 = vunpack.c.l.b16 %v76
  %v248 = vunpack.c.l.b16 %v77
  %v249 = vunpack.c.l.b16 %v78
  %v250 = vunpack.c.l.b16 %v79
  %v251 = vunpack.c.l.b16 %v80
  %v252 = vunpack.c.l.b16 %v81
  %v253 = vunpack.c.l.b16 %v82
  %v254 = vunpack.c.l.b16 %v83
  %v255 = vunpack.c.l.b16 %v84
  %v256 = vunpack.c.l.b16 %v85
  %v257 = vunpack.c.l.b16 %v86
  %v258 = vunpack.c.l.b16 %v87
  %v259 = vunpack.c.l.b16 %v88
  %v260 = vunpack.c.l.b16 %v89
  %v261 = vunpack.c.l.b16 %v90
  %v262 = vunpack.c.l.b16 %v91
  %v263 = vunpack.c.l.b16 %v92
  %v264 = vunpack.c.l.b16 %v93
  %v265 = vunpack.c.l.b16 %v94
  %v266 = vunpack.c.l.b16 %v95
  %v267 = vunpack.c.l.b16 %v96
  %v268 = vunpack.c.l.b16 %v97
  %v269 = vunpack.c.l.b16 %v98
  %v270 = vunpack.c.l.b16 %v99
  %v271 = vunpack.c.l.b16 %v100
  %v272 = vunpack.c.l.b16 %v101
  %v273 = vunpack.c.l.b16 %v102
  %v274 = vunpack.c.l.b16 %v103
  %v275 = vunpack.c.l.b16 %v104
  %v276 = vunpack.c.l.b16 %v105
  %v277 = vunpack.c.l.b16 %v106
  %v278 = vunpack.c.l.b16 %v107
  %v279 = vunpack.c.l.b16 %v108
  %v280 = vunpack.c.l.b16 %v109
  %v281 = vunpack.c.l.b16 %v110
  %v282 = vpack.c.b16 %v211, %v210
  %v283 = vpack.c.b16 %v213, %v212
  %v284 = vpack.c.b16 %v215, %v214
  %v285 = vpack.c.b16 %v217, %v216
  %v286 = vpack.c.b16 %v219, %v218
  %v287 = vpack.c.b16 %v221, %v220
  %v288 = vpack.c.b16 %v223, %v222
  %v289 = vpack.c.b16 %v225, %v224
  %v290 = vpack.c.b16 %v227, %v226
  %v291 = vpack.c.b16 %v229, %v228
  %v292 = vpack.c.b16 %v231, %v230
  %v293 = vpack.c.b16 %v233, %v232
  %v294 = vpack.c.b16 %v235, %v234
  %v295 = vpack.c.b16 %v237, %v236
  %v296 = vpack.c.b16 %v239, %v238
  %v297 = vpack.c.b16 %v241, %v240
  %v298 = vpack.c.b16 %v243, %v242
  %v299 = vpack.c.b16 %v245, %v244
  %v300 = vpack.c.b16 %v247, %v246
  %v301 = vpack.c.b16 %v249, %v248
  %v302 = vpack.c.b16 %v251, %v250
  %v303 = vpack.c.b16 %v253, %v252
  %v304 = vpack.c.b16 %v255, %v254
  %v305 = vpack.c.b16 %v257, %v256
  %v306 = vpack.c.b16 %v259, %v258
  %v307 = vpack.c.b16 %v261, %v260
  %v308 = vpack.c.b16 %v263, %v262
  %v309 = vpack.c.b16 %v265, %v264
  %v310 = vpack.c.b16 %v267, %v266
  %v311 = vpack.c.b16 %v269, %v268
  %v312 = vpack.c.b16 %v271, %v270
  %v313 = vpack.c.b16 %v273, %v272
  %v314 = vpack.c.b16 %v275, %v274
  %v315 = vpack.c.b16 %v277, %v276
  %v316 = vpack.c.b16 %v279, %v278
  %v317 = vpack.c.b16 %v281, %v280
  %vm354 = vcmask 523264
  %v356 = vsel %vm354, %v133, 0
  %358 = vmatprep.subr.bf16.mxu0 0
  %359 = vmatpush1.bf16.msra.mxu0 %v282
  %360 = vmatprep.subr.bf16.mxu0 0
  %361 = vmatpush1.bf16.msra.mxu0 %v283
  %362 = vmatprep.subr.bf16.mxu0 0
  %363 = vmatpush1.bf16.msra.mxu0 %v284
  %364 = vmatprep.subr.bf16.mxu0 0
  %365 = vmatpush1.bf16.msra.mxu0 %v285
  %366 = vmatprep.subr.bf16.mxu0 0
  %367 = vmatpush1.bf16.msra.mxu0 %v286
  %368 = vmatprep.subr.bf16.mxu0 0
  %369 = vmatpush1.bf16.msra.mxu0 %v287
  %370 = vmatprep.subr.bf16.mxu0 0
  %371 = vmatpush1.bf16.msra.mxu0 %v288
  %372 = vmatprep.subr.bf16.mxu0 0
  %373 = vmatpush1.bf16.msra.mxu0 %v289
  %374 = vmatprep.subr.bf16.mxu0 0
  %375 = vmatpush1.bf16.msra.mxu0 %v290
  %376 = vmatprep.subr.bf16.mxu0 0
  %377 = vmatpush1.bf16.msra.mxu0 %v291
  %378 = vmatprep.subr.bf16.mxu0 0
  %379 = vmatpush1.bf16.msra.mxu0 %v292
  %380 = vmatprep.subr.bf16.mxu0 0
  %381 = vmatpush1.bf16.msra.mxu0 %v293
  %382 = vmatprep.subr.bf16.mxu0 0
  %383 = vmatpush1.bf16.msra.mxu0 %v294
  %384 = vmatprep.subr.bf16.mxu0 0
  %385 = vmatpush1.bf16.msra.mxu0 %v295
  %386 = vmatprep.subr.bf16.mxu0 0
  %387 = vmatpush1.bf16.msra.mxu0 %v296
  %388 = vmatprep.subr.bf16.mxu0 0
  %389 = vmatpush1.bf16.msra.mxu0 %v297
  %390 = vmatprep.mubr.bf16.mxu0 %v130
  %391 = vmatmul.mubr.bf16.gmra.mrb[0].mxu0 %v129
  %v392 = vpop.f32.mrb[0].mxu0
  %v393 = vadd.f32 %v111, %v392
  %v394 = vpop.f32.mrb[0].mxu0
  %v395 = vpop.f32.mrb[0].mxu0
  %v396 = vadd.f32 %v112, %v395
  %v397 = vpop.f32.mrb[0].mxu0
  %398 = vdwg.mxu0
  %399 = vmatprep.subr.bf16.mxu0 0
  %400 = vmatpush1.bf16.msra.mxu0 %v298
  %401 = vmatprep.subr.bf16.mxu0 0
  %402 = vmatpush1.bf16.msra.mxu0 %v299
  %403 = vmatprep.subr.bf16.mxu0 0
  %404 = vmatpush1.bf16.msra.mxu0 %v300
  %405 = vmatprep.subr.bf16.mxu0 0
  %406 = vmatpush1.bf16.msra.mxu0 %v301
  %407 = vmatprep.subr.bf16.mxu0 0
  %408 = vmatpush1.bf16.msra.mxu0 %v302
  %409 = vmatprep.subr.bf16.mxu0 0
  %410 = vmatpush1.bf16.msra.mxu0 %v303
  %411 = vmatprep.subr.bf16.mxu0 0
  %412 = vmatpush1.bf16.msra.mxu0 %v304
  %413 = vmatprep.subr.bf16.mxu0 0
  %414 = vmatpush1.bf16.msra.mxu0 %v305
  %415 = vmatprep.subr.bf16.mxu0 0
  %416 = vmatpush1.bf16.msra.mxu0 %v306
  %417 = vmatprep.subr.bf16.mxu0 0
  %418 = vmatpush1.bf16.msra.mxu0 %v307
  %419 = vmatprep.subr.bf16.mxu0 0
  %420 = vmatpush1.bf16.msra.mxu0 %v308
  %421 = vmatprep.subr.bf16.mxu0 0
  %422 = vmatpush1.bf16.msra.mxu0 %v309
  %423 = vmatprep.subr.bf16.mxu0 0
  %424 = vmatpush1.bf16.msra.mxu0 %v310
  %425 = vmatprep.subr.bf16.mxu0 0
  %426 = vmatpush1.bf16.msra.mxu0 %v311
  %427 = vmatprep.subr.bf16.mxu0 0
  %428 = vmatpush1.bf16.msra.mxu0 %v312
  %429 = vmatprep.subr.bf16.mxu0 0
  %430 = vmatpush1.bf16.msra.mxu0 %v313
  %431 = vmatprep.mubr.bf16.mxu0 %v132
  %432 = vmatmul.mubr.bf16.gmra.mrb[0].mxu0 %v131
  %v433 = vpop.f32.mrb[0].mxu0
  %v434 = vadd.f32 %v393, %v433
  %v435 = vpop.f32.mrb[0].mxu0
  %v436 = vpop.f32.mrb[0].mxu0
  %v437 = vadd.f32 %v396, %v436
  %v438 = vpop.f32.mrb[0].mxu0
  %439 = vdwg.mxu0
  %440 = vmatprep.subr.bf16.mxu0 0
  %441 = vmatpush1.bf16.msra.mxu0 %v314
  %442 = vmatprep.subr.bf16.mxu0 0
  %443 = vmatpush1.bf16.msra.mxu0 %v315
  %444 = vmatprep.subr.bf16.mxu0 0
  %445 = vmatpush1.bf16.msra.mxu0 %v316
  %446 = vmatprep.subr.bf16.mxu0 0
  %447 = vmatpush1.bf16.msra.mxu0 %v317
  %448 = vmatprep.subr.bf16.mxu0 0
  %449 = vmatpush1.bf16.msra.mxu0 0
  %450 = vmatprep.subr.bf16.mxu0 0
  %451 = vmatpush1.bf16.msra.mxu0 0
  %452 = vmatprep.subr.bf16.mxu0 0
  %453 = vmatpush1.bf16.msra.mxu0 0
  %454 = vmatprep.subr.bf16.mxu0 0
  %455 = vmatpush1.bf16.msra.mxu0 0
  %456 = vmatprep.subr.bf16.mxu0 0
  %457 = vmatpush1.bf16.msra.mxu0 0
  %458 = vmatprep.subr.bf16.mxu0 0
  %459 = vmatpush1.bf16.msra.mxu0 0
  %460 = vmatprep.subr.bf16.mxu0 0
  %461 = vmatpush1.bf16.msra.mxu0 0
  %462 = vmatprep.subr.bf16.mxu0 0
  %463 = vmatpush1.bf16.msra.mxu0 0
  %464 = vmatprep.subr.bf16.mxu0 0
  %465 = vmatpush1.bf16.msra.mxu0 0
  %466 = vmatprep.subr.bf16.mxu0 0
  %467 = vmatpush1.bf16.msra.mxu0 0
  %468 = vmatprep.subr.bf16.mxu0 0
  %469 = vmatpush1.bf16.msra.mxu0 0
  %470 = vmatprep.subr.bf16.mxu0 0
  %471 = vmatpush1.bf16.msra.mxu0 0
  %472 = vmatprep.mubr.bf16.mxu0 0
  %473 = vmatmul.mubr.bf16.gmra.mrb[0].mxu0 %v356
  %v474 = vpop.f32.mrb[0].mxu0
  %v475 = vadd.f32 %v434, %v474
  %v476 = vpop.f32.mrb[0].mxu0
  %v477 = vpop.f32.mrb[0].mxu0
  %v478 = vadd.f32 %v437, %v477
  %v479 = vpop.f32.mrb[0].mxu0
  %480 = vdwg.mxu0
  %v481 = vmax.f32 %v475, 0.0
  %v482 = vmax.f32 %v478, 0.0
  %v483 = vld [vmem:[%s3] sm:$0xff]
  %v484 = vld [vmem:[%s3 + $0x8] sm:$0xff]
  %v485 = vld [vmem:[%s3 + $0x10] sm:$0xff]
  %v486 = vld [vmem:[%s3 + $0x18] sm:$0xff]
  %v487 = vld [vmem:[%s3 + $0x20] sm:$0xff]
  %v488 = vld [vmem:[%s3 + $0x28] sm:$0xff]
  %v489 = vld [vmem:[%s3 + $0x30] sm:$0xff]
  %v490 = vld [vmem:[%s3 + $0x38] sm:$0xff]
  %v491 = vld [vmem:[%s3 + $0x40] sm:$0xff]
  %v492 = vld [vmem:[%s3 + $0x48] sm:$0xff]
  %v493 = vld [vmem:[%s3 + $0x50] sm:$0xff]
  %v494 = vld [vmem:[%s3 + $0x58] sm:$0xff]
  %vm495 = vcmask 130048
  %v497 = vsel %vm495, %v483, 0
  %v500 = vsel %vm495, %v484, 0
  %v503 = vsel %vm495, %v485, 0
  %v506 = vsel %vm495, %v486, 0
  %v509 = vsel %vm495, %v487, 0
  %v512 = vsel %vm495, %v488, 0
  %v515 = vsel %vm495, %v489, 0
  %v518 = vsel %vm495, %v490, 0
  %v521 = vsel %vm495, %v491, 0
  %v524 = vsel %vm495, %v492, 0
  %v527 = vsel %vm495, %v493, 0
  %v530 = vsel %vm495, %v494, 0
  %532 = vmatprep.subr.mxu0 0.0
  %533 = vmatpush1.msra.mxu0 %v481
  %534 = vmatprep.subr.mxu0 0.0
  %535 = vmatpush1.msra.mxu0 %v482
  %536 = vmatprep.subr.mxu0 0.0
  %537 = vmatpush1.msra.mxu0 0.0
  %538 = vmatprep.subr.mxu0 0.0
  %539 = vmatpush1.msra.mxu0 0.0
  %540 = vmatprep.subr.mxu0 0.0
  %541 = vmatpush1.msra.mxu0 0.0
  %542 = vmatprep.subr.mxu0 0.0
  %543 = vmatpush1.msra.mxu0 0.0
  %544 = vmatprep.subr.mxu0 0.0
  %545 = vmatpush1.msra.mxu0 0.0
  %546 = vmatprep.subr.mxu0 0.0
  %547 = vmatpush1.msra.mxu0 0.0
  %548 = vmatprep.subr.mxu0 0.0
  %549 = vmatpush1.msra.mxu0 0.0
  %550 = vmatprep.subr.mxu0 0.0
  %551 = vmatpush1.msra.mxu0 0.0
  %552 = vmatprep.subr.mxu0 0.0
  %553 = vmatpush1.msra.mxu0 0.0
  %554 = vmatprep.subr.mxu0 0.0
  %555 = vmatpush1.msra.mxu0 0.0
  %556 = vmatprep.subr.mxu0 0.0
  %557 = vmatpush1.msra.mxu0 0.0
  %558 = vmatprep.subr.mxu0 0.0
  %559 = vmatpush1.msra.mxu0 0.0
  %560 = vmatprep.subr.mxu0 0.0
  %561 = vmatpush1.msra.mxu0 0.0
  %562 = vmatprep.subr.mxu0 0.0
  %563 = vmatpush1.msra.mxu0 0.0
  %564 = vmatprep.subr.mxu0 0.0
  %565 = vmatpush1.msra.mxu0 0.0
  %566 = vmatprep.subr.mxu0 0.0
  %567 = vmatpush1.msra.mxu0 0.0
  %568 = vmatprep.subr.mxu0 0.0
  %569 = vmatpush1.msra.mxu0 0.0
  %570 = vmatprep.subr.mxu0 0.0
  %571 = vmatpush1.msra.mxu0 0.0
  %572 = vmatprep.subr.mxu0 0.0
  %573 = vmatpush1.msra.mxu0 0.0
  %574 = vmatprep.subr.mxu0 0.0
  %575 = vmatpush1.msra.mxu0 0.0
  %576 = vmatprep.subr.mxu0 0.0
  %577 = vmatpush1.msra.mxu0 0.0
  %578 = vmatprep.subr.mxu0 0.0
  %579 = vmatpush1.msra.mxu0 0.0
  %580 = vmatprep.subr.mxu0 0.0
  %581 = vmatpush1.msra.mxu0 0.0
  %582 = vmatprep.subr.mxu0 0.0
  %583 = vmatpush1.msra.mxu0 0.0
  %584 = vmatprep.subr.mxu0 0.0
  %585 = vmatpush1.msra.mxu0 0.0
  %586 = vmatprep.subr.mxu0 0.0
  %587 = vmatpush1.msra.mxu0 0.0
  %588 = vmatprep.subr.mxu0 0.0
  %589 = vmatpush1.msra.mxu0 0.0
  %590 = vmatprep.subr.mxu0 0.0
  %591 = vmatpush1.msra.mxu0 0.0
  %592 = vmatprep.subr.mxu0 0.0
  %593 = vmatpush1.msra.mxu0 0.0
  %594 = vmatprep.subr.mxu0 0.0
  %595 = vmatpush1.msra.mxu0 0.0
  %596 = vmatprep.mubr.f32.mxu0 0.0
  %597 = vmatmul.mubr.f32.gmra.mrb[0].mxu0 %v497
  %v598 = vpop.f32.mrb[0].mxu0
  %v599 = vadd.f32 0.0, %v598
  %v600 = vpop.f32.mrb[0].mxu0
  %601 = vmatprep.mubr.f32.mxu0 0.0
  %602 = vmatmul.mubr.f32.gmra.mrb[0].mxu0 %v500
  %v603 = vpop.f32.mrb[0].mxu0
  %v604 = vadd.f32 0.0, %v603
  %v605 = vpop.f32.mrb[0].mxu0
  %606 = vmatprep.mubr.f32.mxu0 0.0
  %607 = vmatmul.mubr.f32.gmra.mrb[0].mxu0 %v503
  %v608 = vpop.f32.mrb[0].mxu0
  %v609 = vadd.f32 0.0, %v608
  %v610 = vpop.f32.mrb[0].mxu0
  %611 = vmatprep.mubr.f32.mxu0 0.0
  %612 = vmatmul.mubr.f32.gmra.mrb[0].mxu0 %v506
  %v613 = vpop.f32.mrb[0].mxu0
  %v614 = vadd.f32 0.0, %v613
  %v615 = vpop.f32.mrb[0].mxu0
  %616 = vmatprep.mubr.f32.mxu0 0.0
  %617 = vmatmul.mubr.f32.gmra.mrb[0].mxu0 %v509
  %v618 = vpop.f32.mrb[0].mxu0
  %v619 = vadd.f32 0.0, %v618
  %v620 = vpop.f32.mrb[0].mxu0
  %621 = vmatprep.mubr.f32.mxu0 0.0
  %622 = vmatmul.mubr.f32.gmra.mrb[0].mxu0 %v512
  %v623 = vpop.f32.mrb[0].mxu0
  %v624 = vadd.f32 0.0, %v623
  %v625 = vpop.f32.mrb[0].mxu0
  %626 = vmatprep.mubr.f32.mxu0 0.0
  %627 = vmatmul.mubr.f32.gmra.mrb[0].mxu0 %v515
  %v628 = vpop.f32.mrb[0].mxu0
  %v629 = vadd.f32 0.0, %v628
  %v630 = vpop.f32.mrb[0].mxu0
  %631 = vmatprep.mubr.f32.mxu0 0.0
  %632 = vmatmul.mubr.f32.gmra.mrb[0].mxu0 %v518
  %v633 = vpop.f32.mrb[0].mxu0
  %v634 = vadd.f32 0.0, %v633
  %v635 = vpop.f32.mrb[0].mxu0
  %636 = vmatprep.mubr.f32.mxu0 0.0
  %637 = vmatmul.mubr.f32.gmra.mrb[0].mxu0 %v521
  %v638 = vpop.f32.mrb[0].mxu0
  %v639 = vadd.f32 0.0, %v638
  %v640 = vpop.f32.mrb[0].mxu0
  %641 = vmatprep.mubr.f32.mxu0 0.0
  %642 = vmatmul.mubr.f32.gmra.mrb[0].mxu0 %v524
  %v643 = vpop.f32.mrb[0].mxu0
  %v644 = vadd.f32 0.0, %v643
  %v645 = vpop.f32.mrb[0].mxu0
  %646 = vmatprep.mubr.f32.mxu0 0.0
  %647 = vmatmul.mubr.f32.gmra.mrb[0].mxu0 %v527
  %v648 = vpop.f32.mrb[0].mxu0
  %v649 = vadd.f32 0.0, %v648
  %v650 = vpop.f32.mrb[0].mxu0
  %651 = vmatprep.mubr.f32.mxu0 0.0
  %652 = vmatmul.mubr.f32.gmra.mrb[0].mxu0 %v530
  %v653 = vpop.f32.mrb[0].mxu0
  %v654 = vadd.f32 0.0, %v653
  %v655 = vpop.f32.mrb[0].mxu0
  %656 = vdwg.mxu0
  %v657 = vpack.c.bf16 %v604, %v599
  %v658 = vpack.c.bf16 %v624, %v619
  %v659 = vpack.c.bf16 %v644, %v639
  %v660 = vpack.c.bf16 %v614, %v609
  %v661 = vpack.c.bf16 %v634, %v629
  %v662 = vpack.c.bf16 %v654, %v649
  %v663 = vld [vmem:[%s4] sm:$0xf]
  %v664 = vld [vmem:[%s4 + $0x4] sm:$0xf]
  %v665 = vld [vmem:[%s4 + $0x8] sm:$0xf]
  %v666 = vld [vmem:[%s4 + $0xc] sm:$0xf]
  %v667 = vld [vmem:[%s4 + $0x10] sm:$0xf]
  %v668 = vld [vmem:[%s4 + $0x14] sm:$0xf]
  %v669 = vld [vmem:[%s4 + $0x18] sm:$0xf]
  %v670 = vld [vmem:[%s4 + $0x1c] sm:$0xf]
  %v671 = vld [vmem:[%s4 + $0x20] sm:$0xf]
  %v672 = vld [vmem:[%s4 + $0x24] sm:$0xf]
  %v673 = vld [vmem:[%s4 + $0x28] sm:$0xf]
  %v674 = vld [vmem:[%s4 + $0x2c] sm:$0xf]
  %v675 = vld [vmem:[%s4 + $0x30] sm:$0xf]
  %v676 = vld [vmem:[%s4 + $0x34] sm:$0xf]
  %v677 = vld [vmem:[%s4 + $0x38] sm:$0xf]
  %v678 = vld [vmem:[%s4 + $0x3c] sm:$0xf]
  %v679 = vld [vmem:[%s4 + $0x40] sm:$0xf]
  %v680 = vld [vmem:[%s4 + $0x44] sm:$0xf]
  %v681 = vld [vmem:[%s4 + $0x48] sm:$0xf]
  %v682 = vld [vmem:[%s4 + $0x4c] sm:$0xf]
  %v683 = vld [vmem:[%s4 + $0x50] sm:$0xf]
  %v684 = vld [vmem:[%s4 + $0x54] sm:$0xf]
  %v685 = vld [vmem:[%s4 + $0x58] sm:$0xf]
  %v686 = vld [vmem:[%s4 + $0x5c] sm:$0xf]
  %v687 = vld [vmem:[%s4 + $0x60] sm:$0xf]
  %v688 = vld [vmem:[%s4 + $0x64] sm:$0xf]
  %v689 = vld [vmem:[%s4 + $0x68] sm:$0xf]
  %v690 = vld [vmem:[%s4 + $0x6c] sm:$0xf]
  %v691 = vld [vmem:[%s4 + $0x70] sm:$0xf]
  %v692 = vld [vmem:[%s4 + $0x74] sm:$0xf]
  %v693 = vld [vmem:[%s4 + $0x78] sm:$0xf]
  %v694 = vld [vmem:[%s4 + $0x7c] sm:$0xf]
  %v695 = vld [vmem:[%s4 + $0x80] sm:$0xf]
  %v696 = vld [vmem:[%s4 + $0x84] sm:$0xf]
  %v697 = vld [vmem:[%s4 + $0x88] sm:$0xf]
  %v698 = vld [vmem:[%s4 + $0x8c] sm:$0xf]
  %v699 = vld [vmem:[%s4 + $0x90] sm:$0xf]
  %v700 = vld [vmem:[%s4 + $0x94] sm:$0xf]
  %v701 = vld [vmem:[%s4 + $0x98] sm:$0xf]
  %v702 = vld [vmem:[%s4 + $0x9c] sm:$0xf]
  %v703 = vld [vmem:[%s4 + $0xa0] sm:$0xf]
  %v704 = vld [vmem:[%s4 + $0xa4] sm:$0xf]
  %v705 = vld [vmem:[%s4 + $0xa8] sm:$0xf]
  %v706 = vld [vmem:[%s4 + $0xac] sm:$0xf]
  %v707 = vld [vmem:[%s4 + $0xb0] sm:$0xf]
  %v708 = vld [vmem:[%s4 + $0xb4] sm:$0xf]
  %v709 = vld [vmem:[%s4 + $0xb8] sm:$0xf]
  %v710 = vld [vmem:[%s4 + $0xbc] sm:$0xf]
  %v759 = vunpack.c.l.b16 %v663
  %v760 = vunpack.c.l.b16 %v664
  %v761 = vunpack.c.l.b16 %v665
  %v762 = vunpack.c.l.b16 %v666
  %v763 = vunpack.c.l.b16 %v667
  %v764 = vunpack.c.l.b16 %v668
  %v765 = vunpack.c.l.b16 %v669
  %v766 = vunpack.c.l.b16 %v670
  %v767 = vunpack.c.l.b16 %v671
  %v768 = vunpack.c.l.b16 %v672
  %v769 = vunpack.c.l.b16 %v673
  %v770 = vunpack.c.l.b16 %v674
  %v771 = vunpack.c.l.b16 %v675
  %v772 = vunpack.c.l.b16 %v676
  %v773 = vunpack.c.l.b16 %v677
  %v774 = vunpack.c.l.b16 %v678
  %v775 = vunpack.c.l.b16 %v679
  %v776 = vunpack.c.l.b16 %v680
  %v777 = vunpack.c.l.b16 %v681
  %v778 = vunpack.c.l.b16 %v682
  %v779 = vunpack.c.l.b16 %v683
  %v780 = vunpack.c.l.b16 %v684
  %v781 = vunpack.c.l.b16 %v685
  %v782 = vunpack.c.l.b16 %v686
  %v783 = vunpack.c.l.b16 %v687
  %v784 = vunpack.c.l.b16 %v688
  %v785 = vunpack.c.l.b16 %v689
  %v786 = vunpack.c.l.b16 %v690
  %v787 = vunpack.c.l.b16 %v691
  %v788 = vunpack.c.l.b16 %v692
  %v789 = vunpack.c.l.b16 %v693
  %v790 = vunpack.c.l.b16 %v694
  %v791 = vunpack.c.l.b16 %v695
  %v792 = vunpack.c.l.b16 %v696
  %v793 = vunpack.c.l.b16 %v697
  %v794 = vunpack.c.l.b16 %v698
  %v795 = vunpack.c.l.b16 %v699
  %v796 = vunpack.c.l.b16 %v700
  %v797 = vunpack.c.l.b16 %v701
  %v798 = vunpack.c.l.b16 %v702
  %v799 = vunpack.c.l.b16 %v703
  %v800 = vunpack.c.l.b16 %v704
  %v801 = vunpack.c.l.b16 %v705
  %v802 = vunpack.c.l.b16 %v706
  %v803 = vunpack.c.l.b16 %v707
  %v804 = vunpack.c.l.b16 %v708
  %v805 = vunpack.c.l.b16 %v709
  %v806 = vunpack.c.l.b16 %v710
  %v807 = vpack.c.b16 %v760, %v759
  %v808 = vpack.c.b16 %v762, %v761
  %v809 = vpack.c.b16 %v764, %v763
  %v810 = vpack.c.b16 %v766, %v765
  %v811 = vpack.c.b16 %v768, %v767
  %v812 = vpack.c.b16 %v770, %v769
  %v813 = vpack.c.b16 %v772, %v771
  %v814 = vpack.c.b16 %v774, %v773
  %v815 = vpack.c.b16 %v776, %v775
  %v816 = vpack.c.b16 %v778, %v777
  %v817 = vpack.c.b16 %v780, %v779
  %v818 = vpack.c.b16 %v782, %v781
  %v819 = vpack.c.b16 %v784, %v783
  %v820 = vpack.c.b16 %v786, %v785
  %v821 = vpack.c.b16 %v788, %v787
  %v822 = vpack.c.b16 %v790, %v789
  %v823 = vpack.c.b16 %v792, %v791
  %v824 = vpack.c.b16 %v794, %v793
  %v825 = vpack.c.b16 %v796, %v795
  %v826 = vpack.c.b16 %v798, %v797
  %v827 = vpack.c.b16 %v800, %v799
  %v828 = vpack.c.b16 %v802, %v801
  %v829 = vpack.c.b16 %v804, %v803
  %v830 = vpack.c.b16 %v806, %v805
  %855 = vmatprep.subr.bf16.mxu0 0
  %856 = vmatpush1.bf16.msra.mxu0 %v807
  %857 = vmatprep.subr.bf16.mxu0 0
  %858 = vmatpush1.bf16.msra.mxu0 %v808
  %859 = vmatprep.subr.bf16.mxu0 0
  %860 = vmatpush1.bf16.msra.mxu0 %v809
  %861 = vmatprep.subr.bf16.mxu0 0
  %862 = vmatpush1.bf16.msra.mxu0 %v810
  %863 = vmatprep.subr.bf16.mxu0 0
  %864 = vmatpush1.bf16.msra.mxu0 %v811
  %865 = vmatprep.subr.bf16.mxu0 0
  %866 = vmatpush1.bf16.msra.mxu0 %v812
  %867 = vmatprep.subr.bf16.mxu0 0
  %868 = vmatpush1.bf16.msra.mxu0 %v813
  %869 = vmatprep.subr.bf16.mxu0 0
  %870 = vmatpush1.bf16.msra.mxu0 %v814
  %871 = vmatprep.subr.bf16.mxu0 0
  %872 = vmatpush1.bf16.msra.mxu0 %v815
  %873 = vmatprep.subr.bf16.mxu0 0
  %874 = vmatpush1.bf16.msra.mxu0 %v816
  %875 = vmatprep.subr.bf16.mxu0 0
  %876 = vmatpush1.bf16.msra.mxu0 %v817
  %877 = vmatprep.subr.bf16.mxu0 0
  %878 = vmatpush1.bf16.msra.mxu0 %v818
  %879 = vmatprep.subr.bf16.mxu0 0
  %880 = vmatpush1.bf16.msra.mxu0 %v819
  %881 = vmatprep.subr.bf16.mxu0 0
  %882 = vmatpush1.bf16.msra.mxu0 %v820
  %883 = vmatprep.subr.bf16.mxu0 0
  %884 = vmatpush1.bf16.msra.mxu0 %v821
  %885 = vmatprep.subr.bf16.mxu0 0
  %886 = vmatpush1.bf16.msra.mxu0 %v822
  %887 = vmatprep.mubr.bf16.mxu0 %v658
  %888 = vmatmul.mubr.bf16.gmra.mrb[0].mxu0 %v657
  %v889 = vpop.f32.mrb[0].mxu0
  %v890 = vadd.f32 0.0, %v889
  %v891 = vpop.f32.mrb[0].mxu0
  %v892 = vpop.f32.mrb[0].mxu0
  %v893 = vadd.f32 0.0, %v892
  %v894 = vpop.f32.mrb[0].mxu0
  %895 = vmatprep.mubr.bf16.mxu0 %v661
  %896 = vmatmul.mubr.bf16.gmra.mrb[0].mxu0 %v660
  %v897 = vpop.f32.mrb[0].mxu0
  %v898 = vadd.f32 0.0, %v897
  %v899 = vpop.f32.mrb[0].mxu0
  %v900 = vpop.f32.mrb[0].mxu0
  %v901 = vadd.f32 0.0, %v900
  %v902 = vpop.f32.mrb[0].mxu0
  %903 = vdwg.mxu0
  %904 = vmatprep.subr.bf16.mxu0 0
  %905 = vmatpush1.bf16.msra.mxu0 %v823
  %906 = vmatprep.subr.bf16.mxu0 0
  %907 = vmatpush1.bf16.msra.mxu0 %v824
  %908 = vmatprep.subr.bf16.mxu0 0
  %909 = vmatpush1.bf16.msra.mxu0 %v825
  %910 = vmatprep.subr.bf16.mxu0 0
  %911 = vmatpush1.bf16.msra.mxu0 %v826
  %912 = vmatprep.subr.bf16.mxu0 0
  %913 = vmatpush1.bf16.msra.mxu0 %v827
  %914 = vmatprep.subr.bf16.mxu0 0
  %915 = vmatpush1.bf16.msra.mxu0 %v828
  %916 = vmatprep.subr.bf16.mxu0 0
  %917 = vmatpush1.bf16.msra.mxu0 %v829
  %918 = vmatprep.subr.bf16.mxu0 0
  %919 = vmatpush1.bf16.msra.mxu0 %v830
  %920 = vmatprep.subr.bf16.mxu0 0
  %921 = vmatpush1.bf16.msra.mxu0 0
  %922 = vmatprep.subr.bf16.mxu0 0
  %923 = vmatpush1.bf16.msra.mxu0 0
  %924 = vmatprep.subr.bf16.mxu0 0
  %925 = vmatpush1.bf16.msra.mxu0 0
  %926 = vmatprep.subr.bf16.mxu0 0
  %927 = vmatpush1.bf16.msra.mxu0 0
  %928 = vmatprep.subr.bf16.mxu0 0
  %929 = vmatpush1.bf16.msra.mxu0 0
  %930 = vmatprep.subr.bf16.mxu0 0
  %931 = vmatpush1.bf16.msra.mxu0 0
  %932 = vmatprep.subr.bf16.mxu0 0
  %933 = vmatpush1.bf16.msra.mxu0 0
  %934 = vmatprep.subr.bf16.mxu0 0
  %935 = vmatpush1.bf16.msra.mxu0 0
  %936 = vmatprep.mubr.bf16.mxu0 0
  %937 = vmatmul.mubr.bf16.gmra.mrb[0].mxu0 %v659
  %v938 = vpop.f32.mrb[0].mxu0
  %v939 = vadd.f32 %v890, %v938
  %v940 = vpop.f32.mrb[0].mxu0
  %v941 = vpop.f32.mrb[0].mxu0
  %v942 = vadd.f32 %v893, %v941
  %v943 = vpop.f32.mrb[0].mxu0
  %944 = vmatprep.mubr.bf16.mxu0 0
  %945 = vmatmul.mubr.bf16.gmra.mrb[0].mxu0 %v662
  %v946 = vpop.f32.mrb[0].mxu0
  %v947 = vadd.f32 %v898, %v946
  %v948 = vpop.f32.mrb[0].mxu0
  %v949 = vpop.f32.mrb[0].mxu0
  %v950 = vadd.f32 %v901, %v949
  %v951 = vpop.f32.mrb[0].mxu0
  %952 = vdwg.mxu0
  %v953 = vadd.f32 %v939, %v942
  %v954 = vadd.f32 %v953, %v947
  %v955 = vadd.f32 %v954, %v950
  %v956 = vrot.slane %v955, 4
  %v957 = vadd.f32 %v955, %v956
  %v958 = vrot.slane %v957, 2
  %v959 = vadd.f32 %v957, %v958
  %v960 = vrot.slane %v959, 1
  %v961 = vadd.f32 %v959, %v960
  %v962 = vmul.f32 %v939, %v939
  %v963 = vmul.f32 %v942, %v942
  %v964 = vmul.f32 %v947, %v947
  %v965 = vmul.f32 %v950, %v950
  %v966 = vadd.f32 %v962, %v963
  %v967 = vadd.f32 %v966, %v964
  %v968 = vadd.f32 %v967, %v965
  %v969 = vrot.slane %v968, 4
  %v970 = vadd.f32 %v968, %v969
  %v971 = vrot.slane %v970, 2
  %v972 = vadd.f32 %v970, %v971
  %v973 = vrot.slane %v972, 1
  %v974 = vadd.f32 %v972, %v973
  %v975 = vld [vmem:[%s7] sm:$0xff]
  %v976 = vld [vmem:[%s7 + $0x8] sm:$0xff]
  %v977 = vld [vmem:[%s7 + $0x10] sm:$0xff]
  %v978 = vld [vmem:[%s7 + $0x18] sm:$0xff]
  %v979 = vld [vmem:[%s7 + $0x20] sm:$0xff]
  %v980 = vld [vmem:[%s7 + $0x28] sm:$0xff]
  %v981 = vld [vmem:[%s7 + $0x30] sm:$0xff]
  %v982 = vld [vmem:[%s7 + $0x38] sm:$0xff]
  %v983 = vld [vmem:[%s7 + $0x40] sm:$0xff]
  %v984 = vld [vmem:[%s7 + $0x48] sm:$0xff]
  %v985 = vld [vmem:[%s7 + $0x50] sm:$0xff]
  %v986 = vld [vmem:[%s7 + $0x58] sm:$0xff]
  %v987 = vld [vmem:[%s7 + $0x60] sm:$0xff]
  %v988 = vld [vmem:[%s7 + $0x68] sm:$0xff]
  %v989 = vld [vmem:[%s7 + $0x70] sm:$0xff]
  %v990 = vld [vmem:[%s7 + $0x78] sm:$0xff]
  %991 = vmatprep.subr.mxu0 0.0
  %992 = vmatpush1.msra.mxu0 %v975
  %993 = vmatprep.subr.mxu0 0.0
  %994 = vmatpush1.msra.mxu0 %v976
  %995 = vmatprep.subr.mxu0 0.0
  %996 = vmatpush1.msra.mxu0 %v977
  %997 = vmatprep.subr.mxu0 0.0
  %998 = vmatpush1.msra.mxu0 %v978
  %999 = vmatprep.subr.mxu0 0.0
  %1000 = vmatpush1.msra.mxu0 %v979
  %1001 = vmatprep.subr.mxu0 0.0
  %1002 = vmatpush1.msra.mxu0 %v980
  %1003 = vmatprep.subr.mxu0 0.0
  %1004 = vmatpush1.msra.mxu0 %v981
  %1005 = vmatprep.subr.mxu0 0.0
  %1006 = vmatpush1.msra.mxu0 %v982
  %1007 = vmatprep.subr.mxu0 0.0
  %1008 = vmatpush1.msra.mxu0 %v983
  %1009 = vmatprep.subr.mxu0 0.0
  %1010 = vmatpush1.msra.mxu0 %v984
  %1011 = vmatprep.subr.mxu0 0.0
  %1012 = vmatpush1.msra.mxu0 %v985
  %1013 = vmatprep.subr.mxu0 0.0
  %1014 = vmatpush1.msra.mxu0 %v986
  %1015 = vmatprep.subr.mxu0 0.0
  %1016 = vmatpush1.msra.mxu0 %v987
  %1017 = vmatprep.subr.mxu0 0.0
  %1018 = vmatpush1.msra.mxu0 %v988
  %1019 = vmatprep.subr.mxu0 0.0
  %1020 = vmatpush1.msra.mxu0 %v989
  %1021 = vmatprep.subr.mxu0 0.0
  %1022 = vmatpush1.msra.mxu0 %v990
  %1023 = vmatprep.subr.mxu0 0.0
  %1024 = vmatpush1.msra.mxu0 0.0
  %1025 = vmatprep.subr.mxu0 0.0
  %1026 = vmatpush1.msra.mxu0 0.0
  %1027 = vmatprep.subr.mxu0 0.0
  %1028 = vmatpush1.msra.mxu0 0.0
  %1029 = vmatprep.subr.mxu0 0.0
  %1030 = vmatpush1.msra.mxu0 0.0
  %1031 = vmatprep.subr.mxu0 0.0
  %1032 = vmatpush1.msra.mxu0 0.0
  %1033 = vmatprep.subr.mxu0 0.0
  %1034 = vmatpush1.msra.mxu0 0.0
  %1035 = vmatprep.subr.mxu0 0.0
  %1036 = vmatpush1.msra.mxu0 0.0
  %1037 = vmatprep.subr.mxu0 0.0
  %1038 = vmatpush1.msra.mxu0 0.0
  %1039 = vmatprep.subr.mxu0 0.0
  %1040 = vmatpush1.msra.mxu0 0.0
  %1041 = vmatprep.subr.mxu0 0.0
  %1042 = vmatpush1.msra.mxu0 0.0
  %1043 = vmatprep.subr.mxu0 0.0
  %1044 = vmatpush1.msra.mxu0 0.0
  %1045 = vmatprep.subr.mxu0 0.0
  %1046 = vmatpush1.msra.mxu0 0.0
  %1047 = vmatprep.subr.mxu0 0.0
  %1048 = vmatpush1.msra.mxu0 0.0
  %1049 = vmatprep.subr.mxu0 0.0
  %1050 = vmatpush1.msra.mxu0 0.0
  %1051 = vmatprep.subr.mxu0 0.0
  %1052 = vmatpush1.msra.mxu0 0.0
  %1053 = vmatprep.subr.mxu0 0.0
  %1054 = vmatpush1.msra.mxu0 0.0
  %1055 = vmatprep.mubr.f32.mxu0 0.0
  %1056 = vmatmul.mubr.f32.gmra.mrb[0].mxu0 %v961
  %v1057 = vpop.f32.mrb[0].mxu0
  %v1058 = vadd.f32 0.0, %v1057
  %v1059 = vpop.f32.mrb[0].mxu0
  %1060 = vdwg.mxu0
  %1061 = vmatprep.subr.mxu0 0.0
  %1062 = vmatpush1.msra.mxu0 %v975
  %1063 = vmatprep.subr.mxu0 0.0
  %1064 = vmatpush1.msra.mxu0 %v976
  %1065 = vmatprep.subr.mxu0 0.0
  %1066 = vmatpush1.msra.mxu0 %v977
  %1067 = vmatprep.subr.mxu0 0.0
  %1068 = vmatpush1.msra.mxu0 %v978
  %1069 = vmatprep.subr.mxu0 0.0
  %1070 = vmatpush1.msra.mxu0 %v979
  %1071 = vmatprep.subr.mxu0 0.0
  %1072 = vmatpush1.msra.mxu0 %v980
  %1073 = vmatprep.subr.mxu0 0.0
  %1074 = vmatpush1.msra.mxu0 %v981
  %1075 = vmatprep.subr.mxu0 0.0
  %1076 = vmatpush1.msra.mxu0 %v982
  %1077 = vmatprep.subr.mxu0 0.0
  %1078 = vmatpush1.msra.mxu0 %v983
  %1079 = vmatprep.subr.mxu0 0.0
  %1080 = vmatpush1.msra.mxu0 %v984
  %1081 = vmatprep.subr.mxu0 0.0
  %1082 = vmatpush1.msra.mxu0 %v985
  %1083 = vmatprep.subr.mxu0 0.0
  %1084 = vmatpush1.msra.mxu0 %v986
  %1085 = vmatprep.subr.mxu0 0.0
  %1086 = vmatpush1.msra.mxu0 %v987
  %1087 = vmatprep.subr.mxu0 0.0
  %1088 = vmatpush1.msra.mxu0 %v988
  %1089 = vmatprep.subr.mxu0 0.0
  %1090 = vmatpush1.msra.mxu0 %v989
  %1091 = vmatprep.subr.mxu0 0.0
  %1092 = vmatpush1.msra.mxu0 %v990
  %1093 = vmatprep.subr.mxu0 0.0
  %1094 = vmatpush1.msra.mxu0 0.0
  %1095 = vmatprep.subr.mxu0 0.0
  %1096 = vmatpush1.msra.mxu0 0.0
  %1097 = vmatprep.subr.mxu0 0.0
  %1098 = vmatpush1.msra.mxu0 0.0
  %1099 = vmatprep.subr.mxu0 0.0
  %1100 = vmatpush1.msra.mxu0 0.0
  %1101 = vmatprep.subr.mxu0 0.0
  %1102 = vmatpush1.msra.mxu0 0.0
  %1103 = vmatprep.subr.mxu0 0.0
  %1104 = vmatpush1.msra.mxu0 0.0
  %1105 = vmatprep.subr.mxu0 0.0
  %1106 = vmatpush1.msra.mxu0 0.0
  %1107 = vmatprep.subr.mxu0 0.0
  %1108 = vmatpush1.msra.mxu0 0.0
  %1109 = vmatprep.subr.mxu0 0.0
  %1110 = vmatpush1.msra.mxu0 0.0
  %1111 = vmatprep.subr.mxu0 0.0
  %1112 = vmatpush1.msra.mxu0 0.0
  %1113 = vmatprep.subr.mxu0 0.0
  %1114 = vmatpush1.msra.mxu0 0.0
  %1115 = vmatprep.subr.mxu0 0.0
  %1116 = vmatpush1.msra.mxu0 0.0
  %1117 = vmatprep.subr.mxu0 0.0
  %1118 = vmatpush1.msra.mxu0 0.0
  %1119 = vmatprep.subr.mxu0 0.0
  %1120 = vmatpush1.msra.mxu0 0.0
  %1121 = vmatprep.subr.mxu0 0.0
  %1122 = vmatpush1.msra.mxu0 0.0
  %1123 = vmatprep.subr.mxu0 0.0
  %1124 = vmatpush1.msra.mxu0 0.0
  %1125 = vmatprep.mubr.f32.mxu0 0.0
  %1126 = vmatmul.mubr.f32.gmra.mrb[0].mxu0 %v974
  %v1127 = vpop.f32.mrb[0].mxu0
  %v1128 = vadd.f32 0.0, %v1127
  %v1129 = vpop.f32.mrb[0].mxu0
  %1130 = vdwg.mxu0
  %v1131 = vmul.f32 %v1058, 0.001953125
  %v1132 = vmul.f32 %v1128, 0.001953125
  %v1133 = vmul.f32 %v1131, %v1131
  %v1134 = vsub.f32 %v1132, %v1133
  %v1135 = vld [vmem:[%s5] sm:$0x1]
  %v1136 = vadd.f32 %v1134, 1e-05
  %v1137 = vrsqrt.pop %v1136
  %v1138 = vmul.f32 %v1135, %v1137
  %v1139 = vld [vmem:[%s6] sm:$0x1]
  %v1140 = vmul.f32 %v1131, %v1138
  %v1141 = vsub.f32 %v1139, %v1140
  %v1142 = vld [vmem:[%s8] sm:$0xff]
  %vm1143 = vcmask 64512
  %v1145 = vsel %vm1143, %v1138, 0
  %1147 = vmatprep.subr.mxu0 0.0
  %1148 = vmatpush1.msra.mxu0 %v1142
  %1149 = vmatprep.subr.mxu0 0.0
  %1150 = vmatpush1.msra.mxu0 0.0
  %1151 = vmatprep.subr.mxu0 0.0
  %1152 = vmatpush1.msra.mxu0 0.0
  %1153 = vmatprep.subr.mxu0 0.0
  %1154 = vmatpush1.msra.mxu0 0.0
  %1155 = vmatprep.subr.mxu0 0.0
  %1156 = vmatpush1.msra.mxu0 0.0
  %1157 = vmatprep.subr.mxu0 0.0
  %1158 = vmatpush1.msra.mxu0 0.0
  %1159 = vmatprep.subr.mxu0 0.0
  %1160 = vmatpush1.msra.mxu0 0.0
  %1161 = vmatprep.subr.mxu0 0.0
  %1162 = vmatpush1.msra.mxu0 0.0
  %1163 = vmatprep.subr.mxu0 0.0
  %1164 = vmatpush1.msra.mxu0 0.0
  %1165 = vmatprep.subr.mxu0 0.0
  %1166 = vmatpush1.msra.mxu0 0.0
  %1167 = vmatprep.subr.mxu0 0.0
  %1168 = vmatpush1.msra.mxu0 0.0
  %1169 = vmatprep.subr.mxu0 0.0
  %1170 = vmatpush1.msra.mxu0 0.0
  %1171 = vmatprep.subr.mxu0 0.0
  %1172 = vmatpush1.msra.mxu0 0.0
  %1173 = vmatprep.subr.mxu0 0.0
  %1174 = vmatpush1.msra.mxu0 0.0
  %1175 = vmatprep.subr.mxu0 0.0
  %1176 = vmatpush1.msra.mxu0 0.0
  %1177 = vmatprep.subr.mxu0 0.0
  %1178 = vmatpush1.msra.mxu0 0.0
  %1179 = vmatprep.subr.mxu0 0.0
  %1180 = vmatpush1.msra.mxu0 0.0
  %1181 = vmatprep.subr.mxu0 0.0
  %1182 = vmatpush1.msra.mxu0 0.0
  %1183 = vmatprep.subr.mxu0 0.0
  %1184 = vmatpush1.msra.mxu0 0.0
  %1185 = vmatprep.subr.mxu0 0.0
  %1186 = vmatpush1.msra.mxu0 0.0
  %1187 = vmatprep.subr.mxu0 0.0
  %1188 = vmatpush1.msra.mxu0 0.0
  %1189 = vmatprep.subr.mxu0 0.0
  %1190 = vmatpush1.msra.mxu0 0.0
  %1191 = vmatprep.subr.mxu0 0.0
  %1192 = vmatpush1.msra.mxu0 0.0
  %1193 = vmatprep.subr.mxu0 0.0
  %1194 = vmatpush1.msra.mxu0 0.0
  %1195 = vmatprep.subr.mxu0 0.0
  %1196 = vmatpush1.msra.mxu0 0.0
  %1197 = vmatprep.subr.mxu0 0.0
  %1198 = vmatpush1.msra.mxu0 0.0
  %1199 = vmatprep.subr.mxu0 0.0
  %1200 = vmatpush1.msra.mxu0 0.0
  %1201 = vmatprep.subr.mxu0 0.0
  %1202 = vmatpush1.msra.mxu0 0.0
  %1203 = vmatprep.subr.mxu0 0.0
  %1204 = vmatpush1.msra.mxu0 0.0
  %1205 = vmatprep.subr.mxu0 0.0
  %1206 = vmatpush1.msra.mxu0 0.0
  %1207 = vmatprep.subr.mxu0 0.0
  %1208 = vmatpush1.msra.mxu0 0.0
  %1209 = vmatprep.subr.mxu0 0.0
  %1210 = vmatpush1.msra.mxu0 0.0
  %1211 = vmatprep.mubr.f32.mxu0 0.0
  %1212 = vmatmul.mubr.f32.gmra.mrb[0].mxu0 %v1145
  %v1213 = vpop.f32.mrb[0].mxu0
  %v1214 = vadd.f32 0.0, %v1213
  %v1215 = vpop.f32.mrb[0].mxu0
  %1216 = vdwg.mxu0
  %v1218 = vsel %vm1143, %v1141, 0
  %1220 = vmatprep.subr.mxu0 0.0
  %1221 = vmatpush1.msra.mxu0 %v1142
  %1222 = vmatprep.subr.mxu0 0.0
  %1223 = vmatpush1.msra.mxu0 0.0
  %1224 = vmatprep.subr.mxu0 0.0
  %1225 = vmatpush1.msra.mxu0 0.0
  %1226 = vmatprep.subr.mxu0 0.0
  %1227 = vmatpush1.msra.mxu0 0.0
  %1228 = vmatprep.subr.mxu0 0.0
  %1229 = vmatpush1.msra.mxu0 0.0
  %1230 = vmatprep.subr.mxu0 0.0
  %1231 = vmatpush1.msra.mxu0 0.0
  %1232 = vmatprep.subr.mxu0 0.0
  %1233 = vmatpush1.msra.mxu0 0.0
  %1234 = vmatprep.subr.mxu0 0.0
  %1235 = vmatpush1.msra.mxu0 0.0
  %1236 = vmatprep.subr.mxu0 0.0
  %1237 = vmatpush1.msra.mxu0 0.0
  %1238 = vmatprep.subr.mxu0 0.0
  %1239 = vmatpush1.msra.mxu0 0.0
  %1240 = vmatprep.subr.mxu0 0.0
  %1241 = vmatpush1.msra.mxu0 0.0
  %1242 = vmatprep.subr.mxu0 0.0
  %1243 = vmatpush1.msra.mxu0 0.0
  %1244 = vmatprep.subr.mxu0 0.0
  %1245 = vmatpush1.msra.mxu0 0.0
  %1246 = vmatprep.subr.mxu0 0.0
  %1247 = vmatpush1.msra.mxu0 0.0
  %1248 = vmatprep.subr.mxu0 0.0
  %1249 = vmatpush1.msra.mxu0 0.0
  %1250 = vmatprep.subr.mxu0 0.0
  %1251 = vmatpush1.msra.mxu0 0.0
  %1252 = vmatprep.subr.mxu0 0.0
  %1253 = vmatpush1.msra.mxu0 0.0
  %1254 = vmatprep.subr.mxu0 0.0
  %1255 = vmatpush1.msra.mxu0 0.0
  %1256 = vmatprep.subr.mxu0 0.0
  %1257 = vmatpush1.msra.mxu0 0.0
  %1258 = vmatprep.subr.mxu0 0.0
  %1259 = vmatpush1.msra.mxu0 0.0
  %1260 = vmatprep.subr.mxu0 0.0
  %1261 = vmatpush1.msra.mxu0 0.0
  %1262 = vmatprep.subr.mxu0 0.0
  %1263 = vmatpush1.msra.mxu0 0.0
  %1264 = vmatprep.subr.mxu0 0.0
  %1265 = vmatpush1.msra.mxu0 0.0
  %1266 = vmatprep.subr.mxu0 0.0
  %1267 = vmatpush1.msra.mxu0 0.0
  %1268 = vmatprep.subr.mxu0 0.0
  %1269 = vmatpush1.msra.mxu0 0.0
  %1270 = vmatprep.subr.mxu0 0.0
  %1271 = vmatpush1.msra.mxu0 0.0
  %1272 = vmatprep.subr.mxu0 0.0
  %1273 = vmatpush1.msra.mxu0 0.0
  %1274 = vmatprep.subr.mxu0 0.0
  %1275 = vmatpush1.msra.mxu0 0.0
  %1276 = vmatprep.subr.mxu0 0.0
  %1277 = vmatpush1.msra.mxu0 0.0
  %1278 = vmatprep.subr.mxu0 0.0
  %1279 = vmatpush1.msra.mxu0 0.0
  %1280 = vmatprep.subr.mxu0 0.0
  %1281 = vmatpush1.msra.mxu0 0.0
  %1282 = vmatprep.subr.mxu0 0.0
  %1283 = vmatpush1.msra.mxu0 0.0
  %1284 = vmatprep.mubr.f32.mxu0 0.0
  %1285 = vmatmul.mubr.f32.gmra.mrb[0].mxu0 %v1218
  %v1286 = vpop.f32.mrb[0].mxu0
  %v1287 = vadd.f32 0.0, %v1286
  %v1288 = vpop.f32.mrb[0].mxu0
  %1289 = vdwg.mxu0
  %v1290 = vlaneseq
  %v1291 = vshrl.u32 %v1290, 7
  %v1292 = vsub.s32 0, %v1291
  %v1293 = vrot.slane %v1214, %v1292
  %v1294 = vmul.f32 %v939, %v1293
  %v1295 = vmul.f32 %v942, %v1293
  %v1296 = vmul.f32 %v947, %v1293
  %v1297 = vmul.f32 %v950, %v1293
  %v1298 = vlaneseq
  %v1299 = vshrl.u32 %v1298, 7
  %v1300 = vsub.s32 0, %v1299
  %v1301 = vrot.slane %v1287, %v1300
  %v1302 = vadd.f32 %v1294, %v1301
  %v1303 = vadd.f32 %v1295, %v1301
  %v1304 = vadd.f32 %v1296, %v1301
  %v1305 = vadd.f32 %v1297, %v1301
  %1306 = vst [vmem:[%s9] sm:$0xff] %v1302
  %1307 = vst [vmem:[%s9 + $0x8] sm:$0xff] %v1303
  %1308 = vst [vmem:[%s9 + $0x10] sm:$0xff] %v1304
  %1309 = vst [vmem:[%s9 + $0x18] sm:$0xff] %v1305
  // Predicated region
  $region38: #{cond_unet_block_innermost.1} parent=0 // pred_check
    _
  $region39: #{cond_unet_block_innermost.1} parent=0 // pred_check_branch
    %1311 = sbr.rel (0) target = $region41
  $region40: #{cond_unet_block_innermost.1} parent=0 // pred_region
    _
  $region41: #{cond_unet_block_innermost.1} parent=0 // pred_fallthru
    _
  // Predicated region
  $region42: #{cond_unet_block_innermost.1} parent=0 // pred_check
    _
  $region43: #{cond_unet_block_innermost.1} parent=0 // pred_check_branch
    %1313 = sbr.rel (0) target = $region45
  $region44: #{cond_unet_block_innermost.1} parent=0 // pred_region
    _
  $region45: #{cond_unet_block_innermost.1} parent=0 // pred_fallthru
    _

</llo_original>
